<compile_context>
chip_gen: v5e
topology: v5e:2x2
jax: 0.10.0
libtpu: 0.0.40
codegen_flags: <defaults>
</compile_context>

<pallas_src>
import functools
import math

import jax
import jax.numpy as jnp
from jax.experimental import pallas as pl
from jax.experimental.pallas import tpu as pltpu


def make_positional_table(d_model: int, max_len: int) -> jnp.ndarray:
    """Deterministic sinusoidal table, shape (max_len, 1, d_model), float32."""
    assert d_model % 2 == 0, "sinusoidal PE requires an even d_model"
    position = jnp.arange(0, max_len, dtype=jnp.float32)[:, None]             # (L, 1)
    div_term = jnp.exp(
        jnp.arange(0, d_model, 2, dtype=jnp.float32) * (-math.log(10000.0) / d_model)
    )                                                                          # (D/2,)
    pe = jnp.zeros((max_len, d_model), dtype=jnp.float32)
    pe = pe.at[:, 0::2].set(jnp.sin(position * div_term))
    pe = pe.at[:, 1::2].set(jnp.cos(position * div_term))
    # unsqueeze(0).transpose(0, 1) -> (max_len, 1, d_model)
    return pe[:, None, :]


def _pe_add_kernel(freq_ref, x_ref, o_ref, phase_ref=None, *,
                   d_model: int, batch: int, per_batch: bool):
    # NOTE: actual positional signature is (freq_ref, phase_ref, x_ref, o_ref);
    # see the wrapper below.  (Kept explicit there to avoid confusion.)
    raise NotImplementedError  # pragma: no cover


def _pe_kernel(freq_ref, phase_ref, x_ref, o_ref, *,
               d_model: int, batch: int, per_batch: bool):
    # freq_ref / phase_ref: (1, W) constant rows (VMEM-resident, one DMA each)
    #   W = d_model when per_batch, else batch * d_model
    # x_ref / o_ref: (tile_s, batch * d_model) lane-dense tiles
    tile_s = x_ref.shape[0]
    i = pl.program_id(0)
    # absolute sequence position of every row in this tile
    pos = (i * tile_s
           + jax.lax.broadcasted_iota(jnp.int32, (tile_s, 1), 0)).astype(jnp.float32)
    # single transcendental: even feature -> sin(angle), odd -> sin(angle + pi/2) == cos(angle)
    angle = pos * freq_ref[...] + phase_ref[...]
    pe = jnp.sin(angle).astype(x_ref.dtype)
    if per_batch:
        # pe has width d_model; reuse it across the batch (static lane-aligned slices)
        for b in range(batch):
            lo = b * d_model
            o_ref[:, lo:lo + d_model] = x_ref[:, lo:lo + d_model] + pe
    else:
        o_ref[...] = x_ref[...] + pe


def _round_up(x: int, m: int) -> int:
    return ((x + m - 1) // m) * m


def _sublane_multiple(dtype) -> int:
    """Packed-sublane multiple: 8 for 4-byte, 16 for 2-byte, 32 for 1-byte dtypes."""
    itemsize = jnp.dtype(dtype).itemsize
    return max(8, 32 // max(itemsize, 1))


def _tile_target_bytes() -> int:
    """Per-generation tile target (all safe under vmem_limit_bytes=48 MiB)."""
    try:
        kind = jax.devices()[0].device_kind.lower()
    except Exception:  # pragma: no cover - defensive
        kind = ""
    if "v5 lite" in kind or "v5e" in kind or "v5litepod" in kind:
        return 3 << 20          # v5e: smaller working set, ~820 GB/s HBM
    return 5 << 20              # v6e / v7x: amortize ~0.35 us per-step overhead


def _choose_tile_s(seq_len: int, row_bytes: int, sublane: int, target_bytes: int) -> int:
    """Tile rows: multiple of the sublane packing, ~target_bytes, >= 4 grid steps if possible."""
    if seq_len <= sublane:
        return seq_len                                   # full-extent block, single step
    tile = max(sublane, (target_bytes // max(row_bytes, 1)) // sublane * sublane)
    # keep >= 4 grid steps where the sequence allows it (>= 2 per v7x TensorCore)
    tile_4steps = max(sublane, _round_up(pl.cdiv(seq_len, 4), sublane))
    tile = min(tile, tile_4steps)
    return min(tile, _round_up(seq_len, sublane))


def positional_encoding_forward(x: jnp.ndarray,
                                *,
                                force_pallas: bool = False,
                                min_pallas_bytes: int = 1 << 20,
                                donate_x: bool = False) -> jnp.ndarray:
    """x: (S, B, D). Returns x + sinusoidal_pe[:S] (eval-mode dropout == identity)."""
    S, B, D = x.shape
    assert D % 2 == 0, "sinusoidal PE requires an even d_model"

    if not force_pallas and x.size * x.dtype.itemsize < min_pallas_bytes:
        # Tiny tensors: a fused XLA add beats any pallas_call launch overhead.
        return x + make_positional_table(D, S).astype(x.dtype)

    BD = B * D
    x2 = x.reshape(S, BD)                                          # lane-dense view

    # PE is batch-independent: generate it D-wide and reuse it across B whenever
    # the D-wide slices are lane-aligned; otherwise generate it full-width.
    per_batch = (D % 128 == 0) and (B > 1)
    width = D if per_batch else BD

    # per-column frequency: freq[d] = exp(-(2*(d//2)) * ln(10000)/D)
    half = (jnp.arange(D, dtype=jnp.float32) // 2) * 2.0
    freq_d = jnp.exp(half * (-math.log(10000.0) / D))              # (D,)
    # per-column phase: 0 for even features (sin), pi/2 for odd features (cos)
    phase_d = jnp.where(jnp.arange(D) % 2 == 1,
                        jnp.float32(math.pi / 2), jnp.float32(0.0))  # (D,)
    if per_batch:
        freq = freq_d.reshape(1, D)
        phase = phase_d.reshape(1, D)
    else:
        freq = jnp.tile(freq_d, (B,)).reshape(1, BD)
        phase = jnp.tile(phase_d, (B,)).reshape(1, BD)

    sublane = _sublane_multiple(x.dtype)
    tile_s = _choose_tile_s(S, BD * x.dtype.itemsize, sublane, _tile_target_bytes())
    grid = (pl.cdiv(S, tile_s),)

    kernel = functools.partial(_pe_kernel, d_model=D, batch=B, per_batch=per_batch)

    out2 = pl.pallas_call(
        kernel,
        out_shape=jax.ShapeDtypeStruct((S, BD), x.dtype),
        grid_spec=pltpu.PrefetchScalarGridSpec(
            num_scalar_prefetch=0,
            grid=grid,
            in_specs=[
                pl.BlockSpec((1, width), lambda i: (0, 0)),        # freq (constant block)
                pl.BlockSpec((1, width), lambda i: (0, 0)),        # phase (constant block)
                pl.BlockSpec((tile_s, BD), lambda i: (i, 0)),      # streamed x tiles
            ],
            out_specs=pl.BlockSpec((tile_s, BD), lambda i: (i, 0)),
        ),
        compiler_params=pltpu.CompilerParams(
            dimension_semantics=("parallel",),
            vmem_limit_bytes=48 << 20,   # fits v7x 64 MiB physical; ample on v5e/v6e
        ),
        # in-place add when the caller donates x (halves peak HBM footprint)
        input_output_aliases=({2: 0} if donate_x else {}),
    )(freq, phase, x2)

    # eval-mode dropout == identity
    return out2.reshape(S, B, D)


if __name__ == "__main__":
    d_model = 128
    max_len = 64
    seq_len = 16
    batch = 2

    key = jax.random.PRNGKey(0)
    x = jax.random.normal(key, (seq_len, batch, d_model), dtype=jnp.float32)

    # force the Pallas path even at demo scale so the kernel is exercised
    y = positional_encoding_forward(x, force_pallas=True)
    y = jax.block_until_ready(y)

    # reference (plain JAX) check against the faithful sinusoidal table
    pe = make_positional_table(d_model, max_len)
    y_ref = x + pe[:seq_len]
    assert y.shape == (seq_len, batch, d_model)
    assert jnp.allclose(y, y_ref, atol=1e-5, rtol=1e-5), float(jnp.max(jnp.abs(y - y_ref)))

    print("KERNEL_OK")
</pallas_src>

<mosaic_0001>
module attributes {stable_mosaic.version = 11 : i64} {
  func.func @_pe_kernel(%arg0: i32, %arg1: memref<1x128xf32, #tpu.memory_space<vmem>>, %arg2: memref<1x128xf32, #tpu.memory_space<vmem>>, %arg3: memref<8x256xf32, #tpu.memory_space<vmem>>, %arg4: memref<8x256xf32, #tpu.memory_space<vmem>>) attributes {dimension_semantics = [#tpu.dimension_semantics<parallel>], iteration_bounds = array<i64: 2>, scalar_prefetch = 0 : i64, scratch_operands = 0 : i64, tpu.core_type = #tpu.core_type<tc>, window_params = [{pipeline_mode = #tpu.pipeline_mode<synchronous>, transform_indices = @transform_0, window_bounds = array<i64: 1, 128>}, {pipeline_mode = #tpu.pipeline_mode<synchronous>, transform_indices = @transform_1, window_bounds = array<i64: 1, 128>}, {transform_indices = @transform_2, window_bounds = array<i64: 8, 256>}, {transform_indices = @transform_3, window_bounds = array<i64: 8, 256>}]} {
    %c8_i32 = arith.constant 8 : i32
    %0 = arith.muli %arg0, %c8_i32 : i32
    %1 = tpu.iota {dimensions = array<i32: 0>} : vector<8x1xi32>
    %2 = vector.broadcast %0 : i32 to vector<8x1xi32>
    %3 = arith.addi %2, %1 : vector<8x1xi32>
    %4 = arith.sitofp %3 : vector<8x1xi32> to vector<8x1xf32>
    %c0 = arith.constant 0 : index
    %c0_0 = arith.constant 0 : index
    %5 = vector.load %arg1[%c0, %c0_0] : memref<1x128xf32, #tpu.memory_space<vmem>>, vector<1x128xf32>
    %6 = vector.broadcast %4 : vector<8x1xf32> to vector<8x128xf32>
    %7 = vector.broadcast %5 : vector<1x128xf32> to vector<8x128xf32>
    %8 = arith.mulf %6, %7 : vector<8x128xf32>
    %c0_1 = arith.constant 0 : index
    %c0_2 = arith.constant 0 : index
    %9 = vector.load %arg2[%c0_1, %c0_2] : memref<1x128xf32, #tpu.memory_space<vmem>>, vector<1x128xf32>
    %10 = vector.broadcast %9 : vector<1x128xf32> to vector<8x128xf32>
    %11 = arith.addf %8, %10 : vector<8x128xf32>
    %12 = math.sin %11 : vector<8x128xf32>
    %c0_3 = arith.constant 0 : index
    %c0_4 = arith.constant 0 : index
    %13 = vector.load %arg3[%c0_3, %c0_4] : memref<8x256xf32, #tpu.memory_space<vmem>>, vector<8x128xf32>
    %14 = arith.addf %13, %12 : vector<8x128xf32>
    %c0_5 = arith.constant 0 : index
    %c0_6 = arith.constant 0 : index
    %15 = vector.load %arg4[%c0_5, %c0_6] : memref<8x256xf32, #tpu.memory_space<vmem>>, vector<8x128xf32>
    tpu.vector_store %arg4[%c0_5, %c0_6], %14 {strides = array<i32>} : memref<8x256xf32, #tpu.memory_space<vmem>>, vector<8x128xf32>,
    %c0_7 = arith.constant 0 : index
    %c128 = arith.constant 128 : index
    %16 = vector.load %arg3[%c0_7, %c128] : memref<8x256xf32, #tpu.memory_space<vmem>>, vector<8x128xf32>
    %17 = arith.addf %16, %12 : vector<8x128xf32>
    %c0_8 = arith.constant 0 : index
    %c128_9 = arith.constant 128 : index
    %18 = vector.load %arg4[%c0_8, %c128_9] : memref<8x256xf32, #tpu.memory_space<vmem>>, vector<8x128xf32>
    tpu.vector_store %arg4[%c0_8, %c128_9], %17 {strides = array<i32>} : memref<8x256xf32, #tpu.memory_space<vmem>>, vector<8x128xf32>,
    return
  }
  func.func @transform_0(%arg0: i32) -> (i32, i32) {
    %c0_i32 = arith.constant 0 : i32
    %c0_i32_0 = arith.constant 0 : i32
    %c0_i32_1 = arith.constant 0 : i32
    return %c0_i32, %c0_i32_0 : i32, i32
  }
  func.func @transform_1(%arg0: i32) -> (i32, i32) {
    %c0_i32 = arith.constant 0 : i32
    %c0_i32_0 = arith.constant 0 : i32
    %c0_i32_1 = arith.constant 0 : i32
    return %c0_i32, %c0_i32_0 : i32, i32
  }
  func.func @transform_2(%arg0: i32) -> (i32, i32) {
    %c0_i32 = arith.constant 0 : i32
    %c0_i32_0 = arith.constant 0 : i32
    return %arg0, %c0_i32 : i32, i32
  }
  func.func @transform_3(%arg0: i32) -> (i32, i32) {
    %c0_i32 = arith.constant 0 : i32
    %c0_i32_0 = arith.constant 0 : i32
    return %arg0, %c0_i32 : i32, i32
  }
}

</mosaic_0001>

<llo_original>
// kernel: tpu_custom_call.1
$region0: #{tpu_custom_call.1}
  #allocation0 [shape = 'u32[]', space=smem, size = 0x4, offset = 0x4, fixed_abs, tag = 'smem constant byte address 0x4 - core index']
  #allocation1 [shape = 'u32[72,128]{1,0:T(1,128)}', space=vmem, size = 0x9000, scoped, tag = 'internal scratch']
  %s0 = inlined_call_operand.hbm [shape: f32[1,128], index: 0, kind: input, shape index: {}]
  %s1 = inlined_call_operand.hbm [shape: f32[1,128], index: 1, kind: input, shape index: {}]
  %s2 = inlined_call_operand.hbm [shape: f32[16,256], index: 2, kind: input, shape index: {}]
  %s3 = inlined_call_operand.hbm [shape: f32[16,256], index: 3, kind: output, shape index: {}]
  %s4 = sld [smem:[#allocation0]]
  $region57: #{tpu_custom_call.1} parent=0
    _
  %s6 = ssub.s32 1, %s4
  %s7 = scalar_select 0, %s6, %s4
  $region1: #{tpu_custom_call.1} parent=0
    #allocation2 [shape = 'u8[512]{0}', space=vmem, size = 0x400, scoped, tag = 'input window, operand 0, single buffered']
    #allocation3 [shape = 's32[2]{0}', space=sflag, size = 0x8, scoped, tag = 'scoped memory for tpu_custom_call.1']
    #allocation4 [shape = 's32[2]{0}', space=sflag, size = 0x8, scoped, tag = 'scoped memory for tpu_custom_call.1']
    #allocation5 [shape = 'u8[512]{0}', space=vmem, size = 0x400, scoped, tag = 'input window, operand 1, single buffered']
    #allocation6 [shape = 's32[1]{0}', space=sflag, size = 0x4, scoped, tag = 'scoped memory for tpu_custom_call.1']
    #allocation7 [shape = 'u8[16384]{0}', space=vmem, size = 0x4000, scoped, tag = 'input window, operand 2']
    #allocation8 [shape = 'u8[16384]{0}', space=vmem, size = 0x4000, scoped, tag = 'output window, operand 0']
    %8 = vsyncpa [#allocation3], 0
    %9 = vsyncpa [#allocation6], 0
    %10 = vsyncpa [#allocation4], 0
    %s11 = scalar_lea.sflag [#allocation4], 1
    %12 = vsyncpa %s11, 0
    loop: start=0, step=1, limit=4
    $region2: #{tpu_custom_call.1} parent=1 // loop_pre_header
      _
    $region3: #{tpu_custom_call.1} parent=1 // loop_header
      %s14 = sphi 0, %s18
      %p15 = scmp.ge.s32.totalorder %s14, 4
      %s22 = sphi 0, %s22
      %s24 = sphi 0, %s22
      %s25 = sphi 0, %s24
      %s39 = sphi 0, %s25
      %s43 = sphi 0, %s43
      %s45 = sphi 0, %s43
      %s46 = sphi 0, %s45
      %s60 = sphi 0, %s46
      %s66 = sphi 0, %s68
      %s69 = sphi 0, %s66
      %s70 = sphi 0, %s69
      %s86 = sphi 0, %s70
      %s92 = sphi 0, %s94
      %s95 = sphi 0, %s92
      %s96 = sphi 0, %s95
      %s112 = sphi 0, %s96
    $region4: #{tpu_custom_call.1} parent=1 // loop_header_branch
      %17 = sbr.rel (%p15) target = $region8
    $region5: #{tpu_custom_call.1} parent=1 // loop_body
      %s19 = ssub.s32 %s14, 1
      %s20 = ssub.s32 %s14, 2
      %s21 = sadd.s32 %s14, 1
      %s23 = sadd.s32 %s22, 1
      %p26 = scmp.eq.s32.totalorder %s14, 1
      %p27 = scmp.ne.s32.totalorder %s22, %s24
      %p28 = scmp.eq.s32.totalorder %s14, 0
      %p29 = por %p27, %p28
      %p30 = scmp.ne.s32.totalorder %s22, %s24
      %p31 = scmp.eq.s32.totalorder %s19, 1
      %p32 = por %p30, %p31
      %p33 = scmp.ne.s32.totalorder %s24, %s25
      %p34 = scmp.eq.s32.totalorder %s19, 0
      %p35 = por %p33, %p34
      %p36 = scmp.ne.s32.totalorder %s24, %s25
      %p37 = scmp.eq.s32.totalorder %s20, 1
      %p38 = por %p36, %p37
      %p40 = scmp.ne.s32.totalorder %s25, %s39
      %p41 = scmp.eq.s32.totalorder %s20, 0
      %p42 = por %p40, %p41
      %s44 = sadd.s32 %s43, 1
      %p47 = scmp.eq.s32.totalorder %s14, 1
      %p48 = scmp.ne.s32.totalorder %s43, %s45
      %p49 = scmp.eq.s32.totalorder %s14, 0
      %p50 = por %p48, %p49
      %p51 = scmp.ne.s32.totalorder %s43, %s45
      %p52 = scmp.eq.s32.totalorder %s19, 1
      %p53 = por %p51, %p52
      %p54 = scmp.ne.s32.totalorder %s45, %s46
      %p55 = scmp.eq.s32.totalorder %s19, 0
      %p56 = por %p54, %p55
      %p57 = scmp.ne.s32.totalorder %s45, %s46
      %p58 = scmp.eq.s32.totalorder %s20, 1
      %p59 = por %p57, %p58
      %p61 = scmp.ne.s32.totalorder %s46, %s60
      %p62 = scmp.eq.s32.totalorder %s20, 0
      %p63 = por %p61, %p62
      %s64 = ssub.s32 %s14, %s21
      %p65 = scmp.eq.s32.totalorder %s64, 0
      %s67 = sadd.s32 %s66, 1
      %s68 = scalar_select %p65, %s66, %s67
      %p71 = pneg %p65
      %p72 = scmp.eq.s32.totalorder %s14, 1
      %p73 = por %p71, %p72
      %p74 = scmp.ne.s32.totalorder %s66, %s69
      %p75 = scmp.eq.s32.totalorder %s14, 0
      %p76 = por %p74, %p75
      %p77 = scmp.ne.s32.totalorder %s66, %s69
      %p78 = scmp.eq.s32.totalorder %s19, 1
      %p79 = por %p77, %p78
      %p80 = scmp.ne.s32.totalorder %s69, %s70
      %p81 = scmp.eq.s32.totalorder %s19, 0
      %p82 = por %p80, %p81
      %p83 = scmp.ne.s32.totalorder %s69, %s70
      %p84 = scmp.eq.s32.totalorder %s20, 1
      %p85 = por %p83, %p84
      %p87 = scmp.ne.s32.totalorder %s70, %s86
      %p88 = scmp.eq.s32.totalorder %s20, 0
      %p89 = por %p87, %p88
      %s90 = ssub.s32 %s14, %s21
      %p91 = scmp.eq.s32.totalorder %s90, 0
      %s93 = sadd.s32 %s92, 1
      %s94 = scalar_select %p91, %s92, %s93
      %p97 = pneg %p91
      %p98 = scmp.eq.s32.totalorder %s14, 1
      %p99 = por %p97, %p98
      %p100 = scmp.ne.s32.totalorder %s92, %s95
      %p101 = scmp.eq.s32.totalorder %s14, 0
      %p102 = por %p100, %p101
      %p103 = scmp.ne.s32.totalorder %s92, %s95
      %p104 = scmp.eq.s32.totalorder %s19, 1
      %p105 = por %p103, %p104
      %p106 = scmp.ne.s32.totalorder %s95, %s96
      %p107 = scmp.eq.s32.totalorder %s19, 0
      %p108 = por %p106, %p107
      %p109 = scmp.ne.s32.totalorder %s95, %s96
      %p110 = scmp.eq.s32.totalorder %s20, 1
      %p111 = por %p109, %p110
      %p113 = scmp.ne.s32.totalorder %s96, %s112
      %p114 = scmp.eq.s32.totalorder %s20, 0
      %p115 = por %p113, %p114
      %p116 = scmp.le.s32.totalorder 1, %s14
      %p117 = scmp.lt.s32.totalorder %s14, 3
      %p118 = pnand %p116, %p117
      %p119 = pneg %p118
      // Predicated region
      $region9: #{tpu_custom_call.1} parent=5 // pred_check
        _
      $region10: #{tpu_custom_call.1} parent=5 // pred_check_branch
        %121 = sbr.rel (%p118) target = $region12
      $region11: #{tpu_custom_call.1} parent=5 // pred_region
        %s122 = ssub.s32 %s14, 1
        // Predicated region
        $region13: #{tpu_custom_call.1} parent=11 // pred_check
          %p123 = pneg %p35
        $region14: #{tpu_custom_call.1} parent=11 // pred_check_branch
          %125 = sbr.rel (%p123) target = $region16
        $region15: #{tpu_custom_call.1} parent=11 // pred_region
          %127 = vsyncadd [#allocation3], 0
          %s129 = sshll.u32 %s0, 4
          %s130 = int_to_ptr.hbm [resolvable:$true] %s129
          %s131 = sshll.u32 [#allocation2], 4
          %s132 = int_to_ptr.vmem [resolvable:$true] %s131
          %134 = dma.hbm_to_vmem [thread:$0]  %s130, 16, %s132, [#allocation3]
        $region16: #{tpu_custom_call.1} parent=11 // pred_fallthru
          _
        // Predicated region
        $region17: #{tpu_custom_call.1} parent=11 // pred_check
          %p135 = pneg %p56
        $region18: #{tpu_custom_call.1} parent=11 // pred_check_branch
          %137 = sbr.rel (%p135) target = $region20
        $region19: #{tpu_custom_call.1} parent=11 // pred_region
          %139 = vsyncadd [#allocation6], 0
          %s141 = sshll.u32 %s1, 4
          %s142 = int_to_ptr.hbm [resolvable:$true] %s141
          %s143 = sshll.u32 [#allocation5], 4
          %s144 = int_to_ptr.vmem [resolvable:$true] %s143
          %146 = dma.hbm_to_vmem [thread:$0]  %s142, 16, %s144, [#allocation6]
        $region20: #{tpu_custom_call.1} parent=11 // pred_fallthru
          _
      $region12: #{tpu_custom_call.1} parent=5 // pred_fallthru
        _
      %p147 = scmp.lt.s32.totalorder %s14, 2
      // Predicated region
      $region21: #{tpu_custom_call.1} parent=5 // pred_check
        %p148 = pneg %p147
      $region22: #{tpu_custom_call.1} parent=5 // pred_check_branch
        %150 = sbr.rel (%p148) target = $region24
      $region23: #{tpu_custom_call.1} parent=5 // pred_region
        // Predicated region
        $region25: #{tpu_custom_call.1} parent=23 // pred_check
          %p151 = pneg %p76
        $region26: #{tpu_custom_call.1} parent=23 // pred_check_branch
          %153 = sbr.rel (%p151) target = $region28
        $region27: #{tpu_custom_call.1} parent=23 // pred_region
          %s154 = sand.u32 %s14, 1
          %s155 = scalar_lea.sflag [#allocation3], %s154
          %s156 = sand.u32 %s66, 1
          %s157 = smul.addr %s156, 16
          %s158 = scalar_lea.vmem [#allocation7], %s157
          %160 = vsyncadd %s155, 0
          %s161 = smul.addr %s14, 2
          %s162 = smul.addr %s161, 8
          %s163 = scalar_lea.hbm %s2, %s162
          %s165 = sshll.u32 %s163, 4
          %s166 = int_to_ptr.hbm [resolvable:$true] %s165
          %s167 = sshll.u32 %s158, 4
          %s168 = int_to_ptr.vmem [resolvable:$true] %s167
          %170 = dma.hbm_to_vmem [thread:$0]  %s166, 256, %s168, %s155
        $region28: #{tpu_custom_call.1} parent=23 // pred_fallthru
          _
      $region24: #{tpu_custom_call.1} parent=5 // pred_fallthru
        _
      %p171 = scmp.le.s32.totalorder 1, %s14
      %p172 = scmp.lt.s32.totalorder %s14, 3
      %p173 = pnand %p171, %p172
      %p174 = pneg %p173
      // Predicated region
      $region29: #{tpu_custom_call.1} parent=5 // pred_check
        _
      $region30: #{tpu_custom_call.1} parent=5 // pred_check_branch
        %176 = sbr.rel (%p173) target = $region32
      $region31: #{tpu_custom_call.1} parent=5 // pred_region
        %s177 = ssub.s32 %s14, 1
        // Predicated region
        $region33: #{tpu_custom_call.1} parent=31 // pred_check
          %p178 = pneg %p35
        $region34: #{tpu_custom_call.1} parent=31 // pred_check_branch
          %180 = sbr.rel (%p178) target = $region36
        $region35: #{tpu_custom_call.1} parent=31 // pred_region
          %182 = dma.done [#allocation3], 16
        $region36: #{tpu_custom_call.1} parent=31 // pred_fallthru
          _
        // Predicated region
        $region37: #{tpu_custom_call.1} parent=31 // pred_check
          %p183 = pneg %p56
        $region38: #{tpu_custom_call.1} parent=31 // pred_check_branch
          %185 = sbr.rel (%p183) target = $region40
        $region39: #{tpu_custom_call.1} parent=31 // pred_region
          %187 = dma.done [#allocation6], 16
        $region40: #{tpu_custom_call.1} parent=31 // pred_fallthru
          _
        %s188 = sand.u32 %s19, 1
        %s189 = scalar_lea.sflag [#allocation3], %s188
        %s190 = sand.u32 %s69, 1
        %s191 = smul.addr %s190, 16
        %s192 = scalar_lea.vmem [#allocation7], %s191
        // Predicated region
        $region41: #{tpu_custom_call.1} parent=31 // pred_check
          %p193 = pneg %p82
        $region42: #{tpu_custom_call.1} parent=31 // pred_check_branch
          %195 = sbr.rel (%p193) target = $region44
        $region43: #{tpu_custom_call.1} parent=31 // pred_region
          %197 = dma.done %s189, 256
        $region44: #{tpu_custom_call.1} parent=31 // pred_fallthru
          _
        %p198 = pneg %p35
        %p199 = pneg %p32
        %p200 = pneg %p56
        %p201 = pneg %p53
        %s202 = sand.u32 %s19, 1
        %s203 = scalar_lea.sflag [#allocation3], %s202
        %s204 = sand.u32 %s69, 1
        %s205 = smul.addr %s204, 16
        %s206 = scalar_lea.vmem [#allocation7], %s205
        %p207 = pneg %p82
        %p208 = pneg %p79
        %p209 = pneg %p108
        %p210 = pneg %p105
        %s211 = sand.u32 %s95, 1
        %s212 = scalar_lea.sflag [#allocation4], %s211
        %s213 = sand.u32 %s95, 1
        %s214 = smul.addr %s213, 16
        %s215 = scalar_lea.vmem [#allocation8], %s214
        %s216 = smul.u32 %s19, 8
        %v217 = vlaneseq
        %v218 = vshrl.u32 %v217, 7
        %v219 = vstv %s216
        %v220 = vadd.s32 %v219, %v218
        %v221 = vcvt.s32.f32 %v220
        %v222 = vld [vmem:[#allocation2] sm:$0x1]
        %v224 = vperm.slane %v222, 0
        %v226 = vmul.f32 %v221, %v224
        %v227 = vld [vmem:[#allocation5] sm:$0x1]
        %v229 = vperm.slane %v227, 0
        %v231 = vadd.f32 %v226, %v229
        %v232 = vand.u32 2147483647, %v231
        %vm233 = vcmp.le.f32.partialorder %v232, 0.7853982
        %vm234 = vcmp.lt.s32.totalorder %v231, 0
        %v235 = vand.u32 %v231, 2139095040
        %v236 = vshrl.u32 %v235, 23
        %v237 = vsub.s32 %v236, 127
        %v238 = vand.u32 2147483647, %v231
        %v239 = vand.u32 %v238, 8388607
        %v240 = vor.u32 %v239, 8388608
        %v241 = vsub.s32 0, %v240
        %v242 = vadd.s32 %v237, 1
        %vm243 = vcmp.gt.s32.totalorder %v242, 0
        %v244 = vsel %vm243, %v242, 0
        %v245 = vshrl.u32 %v244, 5
        %v246 = vand.u32 %v244, 31
        %v247 = vsub.s32 32, %v246
        %v248 = vshrl.u32 683565275, %v247
        %v249 = vshll.u32 683565275, %v246
        %v250 = vshrl.u32 2475754826, %v247
        %v251 = vor.u32 %v249, %v250
        %v252 = vshll.u32 2475754826, %v246
        %v253 = vshrl.u32 2131351028, %v247
        %v254 = vor.u32 %v252, %v253
        %v255 = vshll.u32 2131351028, %v246
        %v256 = vshrl.u32 2102212464, %v247
        %v257 = vor.u32 %v255, %v256
        %v258 = vshll.u32 2102212464, %v246
        %v259 = vshrl.u32 920167782, %v247
        %v260 = vor.u32 %v258, %v259
        %v261 = vshll.u32 920167782, %v246
        %v262 = vshrl.u32 1326507024, %v247
        %v263 = vor.u32 %v261, %v262
        %vm264 = vcmp.lt.s32.totalorder %v245, 1
        %vm265 = vcmp.lt.s32.totalorder %v245, 2
        %vm266 = vcmp.lt.s32.totalorder %v245, 3
        %vm267 = vcmp.lt.s32.totalorder %v245, 4
        %v268 = vsel %vm264, %v248, %v251
        %v269 = vsel %vm267, %v257, 2102212464
        %v270 = vsel %vm266, %v254, %v269
        %v271 = vsel %vm265, %v268, %v270
        %v272 = vsel %vm264, %v251, %v254
        %v273 = vsel %vm267, %v260, 920167782
        %v274 = vsel %vm266, %v257, %v273
        %v275 = vsel %vm265, %v272, %v274
        %v276 = vsel %vm264, %v254, %v257
        %v277 = vsel %vm267, %v263, 1326507024
        %v278 = vsel %vm266, %v260, %v277
        %v279 = vsel %vm265, %v276, %v278
        %v280 = vshll.u32 %v240, 8
        %v281 = vand.u32 %v280, 65535
        %v282 = vshrl.u32 %v280, 16
        %v283 = vand.u32 %v279, 65535
        %v284 = vshrl.u32 %v279, 16
        %v285 = vmul.u32 %v281, %v283
        %v286 = vmul.u32 %v281, %v284
        %v287 = vmul.u32 %v282, %v283
        %v288 = vmul.u32 %v282, %v284
        %v289 = vshll.u32 %v286, 16
        %v290 = vshrl.u32 %v286, 16
        %v291 = vshll.u32 %v287, 16
        %v292 = vshrl.u32 %v287, 16
        %vm293 = vc.u32 %v285, %v289
        %v294 = vsel %vm293, 1, 0
        %v295 = vadd.s32 %v285, %v289
        %v296 = vadd.s32 %v288, %v294
        %vm297 = vc.u32 %v295, %v291
        %v298 = vsel %vm297, 1, 0
        %v299 = vadd.s32 %v295, %v291
        %v300 = vadd.s32 %v296, %v298
        %v301 = vadd.s32 %v300, %v290
        %v302 = vadd.s32 %v301, %v292
        %v303 = vand.u32 %v280, 65535
        %v304 = vshrl.u32 %v280, 16
        %v305 = vand.u32 %v275, 65535
        %v306 = vshrl.u32 %v275, 16
        %v307 = vmul.u32 %v303, %v305
        %v308 = vmul.u32 %v303, %v306
        %v309 = vmul.u32 %v304, %v305
        %v310 = vmul.u32 %v304, %v306
        %v311 = vshll.u32 %v308, 16
        %v312 = vshrl.u32 %v308, 16
        %v313 = vshll.u32 %v309, 16
        %v314 = vshrl.u32 %v309, 16
        %vm315 = vc.u32 %v307, %v311
        %v316 = vsel %vm315, 1, 0
        %v317 = vadd.s32 %v307, %v311
        %v318 = vadd.s32 %v310, %v316
        %vm319 = vc.u32 %v317, %v313
        %v320 = vsel %vm319, 1, 0
        %v321 = vadd.s32 %v317, %v313
        %v322 = vadd.s32 %v318, %v320
        %v323 = vadd.s32 %v322, %v312
        %v324 = vadd.s32 %v323, %v314
        %v325 = vmul.u32 %v280, %v271
        %v326 = vadd.s32 %v302, %v321
        %vm327 = vc.u32 %v302, %v321
        %v328 = vadd.s32 %v324, 1
        %v329 = vsel %vm327, %v328, %v324
        %v330 = vadd.s32 %v325, %v329
        %v331 = vadd.s32 %v330, 536870912
        %v332 = vshrl.u32 %v331, 30
        %v333 = vshll.u32 %v332, 30
        %v334 = vsub.s32 %v330, %v333
        %vm335 = vcmp.lt.s32.totalorder %v334, 0
        %v336 = vsub.s32 0, %v334
        %v337 = vsel %vm335, %v336, %v334
        %v338 = vclz %v337
        %v339 = vsub.s32 %v338, 2
        %vm340 = vcmp.gt.s32.totalorder 0, %v339
        %v341 = vsel %vm340, 0, %v339
        %v342 = vsub.s32 32, %v341
        %v343 = vshll.u32 %v334, %v341
        %v344 = vshrl.u32 %v326, %v342
        %v345 = vor.u32 %v343, %v344
        %v346 = vsub.s32 4294967266, %v341
        %v347 = vadd.s32 %v346, 127
        %v348 = vshll.u32 %v347, 23
        %v349 = vor.u32 4788187, %v348
        %v350 = vand.u32 2147483647, %v349
        %v352 = vcvt.s32.f32 %v345
        %v353 = vmul.f32 %v352, %v350
        %v354 = vxor.u32 %v353, 2147483648
        %v355 = vsel %vm234, %v354, %v353
        %v356 = vsub.s32 4, %v332
        %v357 = vsel %vm234, %v356, %v332
        %v358 = vsel %vm233, %v231, %v355
        %v359 = vsel %vm233, 0, %v357
        %v360 = vmul.f32 %v358, %v358
        %v361 = vmul.f32 %v360, -0.001358992
        %v362 = vadd.f32 %v361, 0.041655596
        %v363 = vmul.f32 %v360, %v362
        %v364 = vadd.f32 %v363, -0.4999988
        %v365 = vmul.f32 %v360, %v364
        %v366 = vadd.f32 1.0, %v365
        %v367 = vmul.f32 %v358, %v358
        %v368 = vmul.f32 %v367, -0.00019511016
        %v369 = vadd.f32 %v368, 0.008332121
        %v370 = vmul.f32 %v367, %v369
        %v371 = vadd.f32 %v370, -0.16666654
        %v372 = vmul.f32 %v367, %v371
        %v373 = vadd.f32 %v372, 1.0
        %v374 = vmul.f32 %v373, %v358
        %vm375 = vweird.f32 %v231
        %v376 = vadd.s32 %v359, 3
        %v377 = vand.u32 %v376, 3
        %vm378 = vcmp.lt.s32.totalorder %v377, 2
        %vm379 = vcmp.eq.s32.totalorder %v377, 0
        %v380 = vxor.u32 %v374, 2147483648
        %v381 = vsel %vm379, %v366, %v380
        %vm382 = vcmp.eq.s32.totalorder %v377, 2
        %v383 = vxor.u32 %v366, 2147483648
        %v384 = vsel %vm382, %v383, %v374
        %v385 = vsel %vm378, %v381, %v384
        %v386 = vsel %vm375, nan, %v385
        %v387 = vld [vmem:[%s192] sm:$0xff]
        %v388 = vadd.f32 %v387, %v386
        %389 = vst [vmem:[%s215] sm:$0xff] %v388
        %v390 = vld [vmem:[%s192 + $0x8] sm:$0xff]
        %v391 = vadd.f32 %v390, %v386
        %392 = vst [vmem:[%s215 + $0x8] sm:$0xff] %v391
        %s393 = sand.u32 %s95, 1
        %s394 = scalar_lea.sflag [#allocation4], %s393
        %s395 = sand.u32 %s95, 1
        %s396 = smul.addr %s395, 16
        %s397 = scalar_lea.vmem [#allocation8], %s396
        // Predicated region
        $region45: #{tpu_custom_call.1} parent=31 // pred_check
          %p398 = pneg %p105
        $region46: #{tpu_custom_call.1} parent=31 // pred_check_branch
          %400 = sbr.rel (%p398) target = $region48
        $region47: #{tpu_custom_call.1} parent=31 // pred_region
          %402 = vsyncadd %s394, 0
          %s403 = smul.addr %s19, 2
          %s404 = smul.addr %s403, 8
          %s405 = scalar_lea.hbm %s3, %s404
          %s407 = sshll.u32 %s397, 4
          %s408 = int_to_ptr.vmem [resolvable:$true] %s407
          %s409 = sshll.u32 %s405, 4
          %s410 = int_to_ptr.hbm [resolvable:$true] %s409
          %412 = dma.vmem_to_hbm [thread:$0]  %s408, 256, %s410, %s394
        $region48: #{tpu_custom_call.1} parent=31 // pred_fallthru
          _
      $region32: #{tpu_custom_call.1} parent=5 // pred_fallthru
        _
      %p413 = scmp.le.s32.totalorder 2, %s14
      // Predicated region
      $region49: #{tpu_custom_call.1} parent=5 // pred_check
        %p414 = pneg %p413
      $region50: #{tpu_custom_call.1} parent=5 // pred_check_branch
        %416 = sbr.rel (%p414) target = $region52
      $region51: #{tpu_custom_call.1} parent=5 // pred_region
        %s417 = ssub.s32 %s14, 2
        // Predicated region
        $region53: #{tpu_custom_call.1} parent=51 // pred_check
          %p418 = pneg %p111
        $region54: #{tpu_custom_call.1} parent=51 // pred_check_branch
          %420 = sbr.rel (%p418) target = $region56
        $region55: #{tpu_custom_call.1} parent=51 // pred_region
          %s421 = sand.u32 %s96, 1
          %s422 = scalar_lea.sflag [#allocation4], %s421
          %s423 = sand.u32 %s96, 1
          %s424 = smul.addr %s423, 16
          %s425 = scalar_lea.vmem [#allocation8], %s424
          %427 = dma.done %s422, 256
        $region56: #{tpu_custom_call.1} parent=51 // pred_fallthru
          _
      $region52: #{tpu_custom_call.1} parent=5 // pred_fallthru
        _
    $region6: #{tpu_custom_call.1} parent=1 // loop_footer
      %s18 = sadd.s32 1, %s14
    $region7: #{tpu_custom_call.1} parent=1 // loop_footer_branch
      %13 = sbr.rel target = $region3
    $region8: #{tpu_custom_call.1} parent=1 // loop_exit
      _
    %428 = vsyncpa [#allocation3], 1
    %s429 = scalar_lea.sflag [#allocation3], 1
    %430 = vsyncpa %s429, 1
    %431 = vsyncpa [#allocation6], 1
    %432 = vsyncpa [#allocation4], 1
    %s433 = scalar_lea.sflag [#allocation4], 1
    %434 = vsyncpa %s433, 1

</llo_original>
